<compile_context>
chip_gen: v5e
topology: v5e:2x2
jax: 0.10.0
libtpu: 0.0.40
codegen_flags: <defaults>
</compile_context>

<pallas_src>
import jax
import jax.numpy as jnp
from jax import lax
from jax.experimental import pallas as pl
from jax.experimental.pallas import tpu as pltpu


def _dice_reduce_kernel(logits_ref, target_ref,
                        inter_ref, card_ref, tsum_ref,
                        inter_acc, psum_acc, tsum_acc):
    step = pl.program_id(1)
    nsteps = pl.num_programs(1)

    @pl.when(step == 0)
    def _init():
        inter_acc[...] = jnp.zeros_like(inter_acc)
        psum_acc[...] = jnp.zeros_like(psum_acc)
        tsum_acc[...] = jnp.zeros_like(tsum_acc)

    # (B, C, T) logits tile (native dtype) -> f32 softmax over channel axis
    x = logits_ref[...].astype(jnp.float32)
    m = jnp.max(x, axis=1, keepdims=True)
    e = jnp.exp(x - m)
    denom = jnp.sum(e, axis=1, keepdims=True)
    p = e * pl.reciprocal(denom, approx=False)        # EUP recip, full precision

    # (B, T) int labels -> boolean one-hot mask via tiny (1, C, 1) iota broadcast
    t = target_ref[...]
    cls_idx = lax.broadcasted_iota(jnp.int32, (1, x.shape[1], 1), 1)
    hit = t[:, None, :] == cls_idx                    # (B, C, T) bool

    # Hot loop: lane-partial accumulation only (pure VPU vreg adds).
    # Cross-lane reduction is deferred to the epilogue.
    inter_acc[...] += jnp.sum(jnp.where(hit, p, 0.0), axis=0)    # sum over batch
    psum_acc[...] += jnp.sum(p, axis=0)
    tsum_acc[...] += jnp.sum(jnp.where(hit, 1.0, 0.0), axis=0)

    @pl.when(step == nsteps - 1)
    def _finalize():
        inter = jnp.sum(inter_acc[...], axis=1)       # single XLU reduce per shard
        psum = jnp.sum(psum_acc[...], axis=1)
        tsum = jnp.sum(tsum_acc[...], axis=1)
        inter_ref[...] = inter[None, None, :]
        card_ref[...] = (psum + tsum)[None, None, :]  # sum(p + onehot) == sum(p) + sum(onehot)
        tsum_ref[...] = tsum[None, None, :]


def _choose_tile(B, C, hw_shard, in_bytes, budget_bytes, cap=2048):
    """Largest spatial tile (multiple of 128, divides hw_shard) fitting the VMEM budget."""
    # Rough per-lane VMEM cost: double-buffered logits + double-buffered targets
    # + 3 f32 lane-partial accumulators + ~4 full-size f32 temporaries in the body.
    per_lane = (2 * B * C * in_bytes      # logits double buffer (native dtype)
                + 2 * B * 4               # target double buffer (int32)
                + 3 * C * 4               # lane-partial accumulators
                + 4 * B * C * 4)          # in-kernel f32 temporaries
    t = max(128, min(cap, budget_bytes // max(per_lane, 1)))
    t = (t // 128) * 128
    best = 128
    cand = 128
    while cand <= min(t, hw_shard):
        if hw_shard % cand == 0:
            best = cand
        cand += 128
    return best


def dice_loss_multiclass(logits_nchw, target_nhw, *, smooth=0.0, eps=1e-7,
                         log_loss=False, tile=None,
                         vmem_budget_bytes=20 * 1024 * 1024):
    """DiceLoss.forward for mode='multiclass', from_logits=True, classes=None."""
    B, C, H, W = logits_nchw.shape
    HW = H * W
    assert HW % 128 == 0, "H*W must be a multiple of 128 (TPU lane width)"
    # TODO(synk): spatial sizes not divisible by 128 would need a padded tail with
    # a per-pixel validity mask; not implemented.

    # Feedback: DMA the native dtype (e.g. bf16); cast to f32 inside the kernel.
    logits = logits_nchw.reshape(B, C, HW)
    target = target_nhw.reshape(B, HW).astype(jnp.int32)

    # Split the spatial loop into 2 shards when possible; the leading grid axis is
    # marked "parallel" so v7x can run one shard per TensorCore (neutral on 1-TC chips).
    nsplit = 2 if HW % 256 == 0 else 1
    hw_shard = HW // nsplit

    in_bytes = jnp.dtype(logits.dtype).itemsize
    if tile is None:
        tile = _choose_tile(B, C, hw_shard, in_bytes, vmem_budget_bytes)
    assert tile % 128 == 0 and hw_shard % tile == 0
    shard_steps = hw_shard // tile

    grid = (nsplit, shard_steps)
    out_shapes = tuple(jax.ShapeDtypeStruct((nsplit, 1, C), jnp.float32)
                       for _ in range(3))

    inter, card, tsum = pl.pallas_call(
        _dice_reduce_kernel,
        out_shape=out_shapes,
        grid_spec=pltpu.PrefetchScalarGridSpec(
            num_scalar_prefetch=0,
            grid=grid,
            in_specs=[
                pl.BlockSpec((B, C, tile),
                             lambda s, i: (0, 0, s * shard_steps + i)),
                pl.BlockSpec((B, tile),
                             lambda s, i: (0, s * shard_steps + i)),
            ],
            out_specs=[
                pl.BlockSpec((1, 1, C), lambda s, i: (s, 0, 0)),
                pl.BlockSpec((1, 1, C), lambda s, i: (s, 0, 0)),
                pl.BlockSpec((1, 1, C), lambda s, i: (s, 0, 0)),
            ],
            scratch_shapes=[pltpu.VMEM((C, tile), jnp.float32)] * 3,
        ),
        compiler_params=pltpu.CompilerParams(
            dimension_semantics=("parallel", "arbitrary"),
            vmem_limit_bytes=32 * 1024 * 1024,
        ),
    )(logits, target)

    # Sum per-shard partials, then the tiny scalar epilogue
    # (matches soft_dice_score + DiceLoss epilogue).
    inter = jnp.sum(inter[:, 0, :], axis=0)
    card = jnp.sum(card[:, 0, :], axis=0)
    tsum = jnp.sum(tsum[:, 0, :], axis=0)

    dice = (2.0 * inter + smooth) / (jnp.maximum(card, eps) + smooth)
    if log_loss:
        loss = -jnp.log(jnp.maximum(dice, eps))
    else:
        loss = 1.0 - dice
    mask = (tsum > 0).astype(loss.dtype)
    loss = loss * mask
    return jnp.mean(loss)


def _reference_dice_loss(logits_nchw, target_nhw, smooth=0.0, eps=1e-7):
    B, C, H, W = logits_nchw.shape
    p = jax.nn.softmax(logits_nchw.astype(jnp.float32), axis=1).reshape(B, C, -1)
    oh = jax.nn.one_hot(target_nhw.reshape(B, -1), C, dtype=jnp.float32)
    oh = jnp.transpose(oh, (0, 2, 1))  # (B, C, HW)
    inter = jnp.sum(p * oh, axis=(0, 2))
    card = jnp.sum(p + oh, axis=(0, 2))
    dice = (2.0 * inter + smooth) / (jnp.maximum(card, eps) + smooth)
    loss = 1.0 - dice
    mask = (jnp.sum(oh, axis=(0, 2)) > 0).astype(loss.dtype)
    return jnp.mean(loss * mask)


if __name__ == "__main__":
    key = jax.random.PRNGKey(0)
    k1, k2 = jax.random.split(key)
    B, C, H, W = 2, 4, 16, 16
    logits = jax.random.normal(k1, (B, C, H, W), dtype=jnp.float32)
    target = jax.random.randint(k2, (B, H, W), 0, C, dtype=jnp.int32)

    loss = dice_loss_multiclass(logits, target)
    loss = jax.block_until_ready(loss)

    ref = jax.block_until_ready(_reference_dice_loss(logits, target))
    assert jnp.allclose(loss, ref, atol=1e-5, rtol=1e-5), (loss, ref)

    print("KERNEL_OK")
</pallas_src>

<mosaic_0001>
module attributes {stable_mosaic.version = 11 : i64} {
  func.func @_dice_reduce_kernel(%arg0: i32, %arg1: i32, %arg2: memref<2x4x128xf32, #tpu.memory_space<vmem>>, %arg3: memref<2x128xi32, #tpu.memory_space<vmem>>, %arg4: memref<1x1x4xf32, #tpu.memory_space<vmem>>, %arg5: memref<1x1x4xf32, #tpu.memory_space<vmem>>, %arg6: memref<1x1x4xf32, #tpu.memory_space<vmem>>, %arg7: memref<4x128xf32, #tpu.memory_space<vmem>>, %arg8: memref<4x128xf32, #tpu.memory_space<vmem>>, %arg9: memref<4x128xf32, #tpu.memory_space<vmem>>) attributes {dimension_semantics = [#tpu.dimension_semantics<parallel>, #tpu.dimension_semantics<arbitrary>], iteration_bounds = array<i64: 2, 1>, scalar_prefetch = 0 : i64, scratch_operands = 3 : i64, tpu.core_type = #tpu.core_type<tc>, window_params = [{transform_indices = @transform_0, window_bounds = array<i64: 2, 4, 128>}, {transform_indices = @transform_1, window_bounds = array<i64: 2, 128>}, {transform_indices = @transform_2, window_bounds = array<i64: 1, 1, 4>}, {transform_indices = @transform_3, window_bounds = array<i64: 1, 1, 4>}, {transform_indices = @transform_4, window_bounds = array<i64: 1, 1, 4>}]} {
    %c0_i32 = arith.constant 0 : i32
    %0 = arith.cmpi eq, %arg1, %c0_i32 : i32
    %1 = arith.extui %0 : i1 to i32
    %c0_i32_0 = arith.constant 0 : i32
    %2 = arith.cmpi ne, %1, %c0_i32_0 : i32
    scf.if %2 {
      %cst_26 = arith.constant 0.000000e+00 : f32
      %40 = vector.broadcast %cst_26 : f32 to vector<4x128xf32>
      %c0_27 = arith.constant 0 : index
      %c0_28 = arith.constant 0 : index
      %41 = vector.load %arg7[%c0_27, %c0_28] : memref<4x128xf32, #tpu.memory_space<vmem>>, vector<4x128xf32>
      tpu.vector_store %arg7[%c0_27, %c0_28], %40 {strides = array<i32>} : memref<4x128xf32, #tpu.memory_space<vmem>>, vector<4x128xf32>,
      %cst_29 = arith.constant 0.000000e+00 : f32
      %42 = vector.broadcast %cst_29 : f32 to vector<4x128xf32>
      %c0_30 = arith.constant 0 : index
      %c0_31 = arith.constant 0 : index
      %43 = vector.load %arg8[%c0_30, %c0_31] : memref<4x128xf32, #tpu.memory_space<vmem>>, vector<4x128xf32>
      tpu.vector_store %arg8[%c0_30, %c0_31], %42 {strides = array<i32>} : memref<4x128xf32, #tpu.memory_space<vmem>>, vector<4x128xf32>,
      %cst_32 = arith.constant 0.000000e+00 : f32
      %44 = vector.broadcast %cst_32 : f32 to vector<4x128xf32>
      %c0_33 = arith.constant 0 : index
      %c0_34 = arith.constant 0 : index
      %45 = vector.load %arg9[%c0_33, %c0_34] : memref<4x128xf32, #tpu.memory_space<vmem>>, vector<4x128xf32>
      tpu.vector_store %arg9[%c0_33, %c0_34], %44 {strides = array<i32>} : memref<4x128xf32, #tpu.memory_space<vmem>>, vector<4x128xf32>,
    } else {
    }
    %c0 = arith.constant 0 : index
    %c0_1 = arith.constant 0 : index
    %c0_2 = arith.constant 0 : index
    %3 = vector.load %arg2[%c0, %c0_1, %c0_2] : memref<2x4x128xf32, #tpu.memory_space<vmem>>, vector<2x4x128xf32>
    %cst = arith.constant dense<0xFF800000> : vector<2x128xf32>
    %4 = vector.multi_reduction <maximumf>, %3, %cst [1] : vector<2x4x128xf32> to vector<2x128xf32>
    %5 = vector.shape_cast %4 : vector<2x128xf32> to vector<2x1x128xf32>
    %6 = vector.broadcast %5 : vector<2x1x128xf32> to vector<2x4x128xf32>
    %7 = arith.subf %3, %6 : vector<2x4x128xf32>
    %8 = math.exp %7 : vector<2x4x128xf32>
    %cst_3 = arith.constant dense<0.000000e+00> : vector<2x128xf32>
    %9 = vector.multi_reduction <add>, %8, %cst_3 [1] : vector<2x4x128xf32> to vector<2x128xf32>
    %10 = vector.shape_cast %9 : vector<2x128xf32> to vector<2x1x128xf32>
    %11 = tpu.reciprocal %10 : vector<2x1x128xf32> -> vector<2x1x128xf32>
    %12 = vector.broadcast %11 : vector<2x1x128xf32> to vector<2x4x128xf32>
    %13 = arith.mulf %8, %12 : vector<2x4x128xf32>
    %c0_4 = arith.constant 0 : index
    %c0_5 = arith.constant 0 : index
    %14 = vector.load %arg3[%c0_4, %c0_5] : memref<2x128xi32, #tpu.memory_space<vmem>>, vector<2x128xi32>
    %15 = tpu.iota {dimensions = array<i32: 1>} : vector<1x4x1xi32>
    %16 = vector.shape_cast %14 : vector<2x128xi32> to vector<2x1x128xi32>
    %17 = vector.broadcast %16 : vector<2x1x128xi32> to vector<2x4x128xi32>
    %18 = vector.broadcast %15 : vector<1x4x1xi32> to vector<2x4x128xi32>
    %19 = arith.cmpi eq, %17, %18 : vector<2x4x128xi32>
    %c0_6 = arith.constant 0 : index
    %c0_7 = arith.constant 0 : index
    %20 = vector.load %arg7[%c0_6, %c0_7] : memref<4x128xf32, #tpu.memory_space<vmem>>, vector<4x128xf32>
    %cst_8 = arith.constant 0.000000e+00 : f32
    %21 = vector.broadcast %cst_8 : f32 to vector<2x4x128xf32>
    %22 = arith.select %19, %13, %21 : vector<2x4x128xi1>, vector<2x4x128xf32>
    %cst_9 = arith.constant dense<0.000000e+00> : vector<4x128xf32>
    %23 = vector.multi_reduction <add>, %22, %cst_9 [0] : vector<2x4x128xf32> to vector<4x128xf32>
    %24 = arith.addf %20, %23 : vector<4x128xf32>
    %c0_10 = arith.constant 0 : index
    %c0_11 = arith.constant 0 : index
    %25 = vector.load %arg7[%c0_10, %c0_11] : memref<4x128xf32, #tpu.memory_space<vmem>>, vector<4x128xf32>
    tpu.vector_store %arg7[%c0_10, %c0_11], %24 {strides = array<i32>} : memref<4x128xf32, #tpu.memory_space<vmem>>, vector<4x128xf32>,
    %c0_12 = arith.constant 0 : index
    %c0_13 = arith.constant 0 : index
    %26 = vector.load %arg8[%c0_12, %c0_13] : memref<4x128xf32, #tpu.memory_space<vmem>>, vector<4x128xf32>
    %cst_14 = arith.constant dense<0.000000e+00> : vector<4x128xf32>
    %27 = vector.multi_reduction <add>, %13, %cst_14 [0] : vector<2x4x128xf32> to vector<4x128xf32>
    %28 = arith.addf %26, %27 : vector<4x128xf32>
    %c0_15 = arith.constant 0 : index
    %c0_16 = arith.constant 0 : index
    %29 = vector.load %arg8[%c0_15, %c0_16] : memref<4x128xf32, #tpu.memory_space<vmem>>, vector<4x128xf32>
    tpu.vector_store %arg8[%c0_15, %c0_16], %28 {strides = array<i32>} : memref<4x128xf32, #tpu.memory_space<vmem>>, vector<4x128xf32>,
    %c0_17 = arith.constant 0 : index
    %c0_18 = arith.constant 0 : index
    %30 = vector.load %arg9[%c0_17, %c0_18] : memref<4x128xf32, #tpu.memory_space<vmem>>, vector<4x128xf32>
    %cst_19 = arith.constant 1.000000e+00 : f32
    %cst_20 = arith.constant 0.000000e+00 : f32
    %31 = vector.broadcast %cst_19 : f32 to vector<2x4x128xf32>
    %32 = vector.broadcast %cst_20 : f32 to vector<2x4x128xf32>
    %33 = arith.select %19, %31, %32 : vector<2x4x128xi1>, vector<2x4x128xf32>
    %cst_21 = arith.constant dense<0.000000e+00> : vector<4x128xf32>
    %34 = vector.multi_reduction <add>, %33, %cst_21 [0] : vector<2x4x128xf32> to vector<4x128xf32>
    %35 = arith.addf %30, %34 : vector<4x128xf32>
    %c0_22 = arith.constant 0 : index
    %c0_23 = arith.constant 0 : index
    %36 = vector.load %arg9[%c0_22, %c0_23] : memref<4x128xf32, #tpu.memory_space<vmem>>, vector<4x128xf32>
    tpu.vector_store %arg9[%c0_22, %c0_23], %35 {strides = array<i32>} : memref<4x128xf32, #tpu.memory_space<vmem>>, vector<4x128xf32>,
    %c0_i32_24 = arith.constant 0 : i32
    %37 = arith.cmpi eq, %arg1, %c0_i32_24 : i32
    %38 = arith.extui %37 : i1 to i32
    %c0_i32_25 = arith.constant 0 : i32
    %39 = arith.cmpi ne, %38, %c0_i32_25 : i32
    scf.if %39 {
      %c0_26 = arith.constant 0 : index
      %c0_27 = arith.constant 0 : index
      %40 = vector.load %arg7[%c0_26, %c0_27] : memref<4x128xf32, #tpu.memory_space<vmem>>, vector<4x128xf32>
      %cst_28 = arith.constant dense<0.000000e+00> : vector<4xf32>
      %41 = vector.multi_reduction <add>, %40, %cst_28 [1] : vector<4x128xf32> to vector<4xf32>
      %c0_29 = arith.constant 0 : index
      %c0_30 = arith.constant 0 : index
      %42 = vector.load %arg8[%c0_29, %c0_30] : memref<4x128xf32, #tpu.memory_space<vmem>>, vector<4x128xf32>
      %cst_31 = arith.constant dense<0.000000e+00> : vector<4xf32>
      %43 = vector.multi_reduction <add>, %42, %cst_31 [1] : vector<4x128xf32> to vector<4xf32>
      %c0_32 = arith.constant 0 : index
      %c0_33 = arith.constant 0 : index
      %44 = vector.load %arg9[%c0_32, %c0_33] : memref<4x128xf32, #tpu.memory_space<vmem>>, vector<4x128xf32>
      %cst_34 = arith.constant dense<0.000000e+00> : vector<4xf32>
      %45 = vector.multi_reduction <add>, %44, %cst_34 [1] : vector<4x128xf32> to vector<4xf32>
      %46 = vector.shape_cast %41 : vector<4xf32> to vector<1x1x4xf32>
      %c0_35 = arith.constant 0 : index
      %c0_36 = arith.constant 0 : index
      %c0_37 = arith.constant 0 : index
      %47 = vector.load %arg4[%c0_35, %c0_36, %c0_37] : memref<1x1x4xf32, #tpu.memory_space<vmem>>, vector<1x1x4xf32>
      tpu.vector_store %arg4[%c0_35, %c0_36, %c0_37], %46 {strides = array<i32>} : memref<1x1x4xf32, #tpu.memory_space<vmem>>, vector<1x1x4xf32>,
      %48 = arith.addf %43, %45 : vector<4xf32>
      %49 = vector.shape_cast %48 : vector<4xf32> to vector<1x1x4xf32>
      %c0_38 = arith.constant 0 : index
      %c0_39 = arith.constant 0 : index
      %c0_40 = arith.constant 0 : index
      %50 = vector.load %arg5[%c0_38, %c0_39, %c0_40] : memref<1x1x4xf32, #tpu.memory_space<vmem>>, vector<1x1x4xf32>
      tpu.vector_store %arg5[%c0_38, %c0_39, %c0_40], %49 {strides = array<i32>} : memref<1x1x4xf32, #tpu.memory_space<vmem>>, vector<1x1x4xf32>,
      %51 = vector.shape_cast %45 : vector<4xf32> to vector<1x1x4xf32>
      %c0_41 = arith.constant 0 : index
      %c0_42 = arith.constant 0 : index
      %c0_43 = arith.constant 0 : index
      %52 = vector.load %arg6[%c0_41, %c0_42, %c0_43] : memref<1x1x4xf32, #tpu.memory_space<vmem>>, vector<1x1x4xf32>
      tpu.vector_store %arg6[%c0_41, %c0_42, %c0_43], %51 {strides = array<i32>} : memref<1x1x4xf32, #tpu.memory_space<vmem>>, vector<1x1x4xf32>,
    } else {
    }
    return
  }
  func.func @transform_0(%arg0: i32, %arg1: i32) -> (i32, i32, i32) {
    %c1_i32 = arith.constant 1 : i32
    %0 = arith.muli %arg0, %c1_i32 : i32
    %1 = arith.addi %0, %arg1 : i32
    %c0_i32 = arith.constant 0 : i32
    %c0_i32_0 = arith.constant 0 : i32
    %c0_i32_1 = arith.constant 0 : i32
    return %c0_i32, %c0_i32_0, %1 : i32, i32, i32
  }
  func.func @transform_1(%arg0: i32, %arg1: i32) -> (i32, i32) {
    %c1_i32 = arith.constant 1 : i32
    %0 = arith.muli %arg0, %c1_i32 : i32
    %1 = arith.addi %0, %arg1 : i32
    %c0_i32 = arith.constant 0 : i32
    %c0_i32_0 = arith.constant 0 : i32
    return %c0_i32, %1 : i32, i32
  }
  func.func @transform_2(%arg0: i32, %arg1: i32) -> (i32, i32, i32) {
    %c0_i32 = arith.constant 0 : i32
    %c0_i32_0 = arith.constant 0 : i32
    %c0_i32_1 = arith.constant 0 : i32
    return %arg0, %c0_i32, %c0_i32_0 : i32, i32, i32
  }
  func.func @transform_3(%arg0: i32, %arg1: i32) -> (i32, i32, i32) {
    %c0_i32 = arith.constant 0 : i32
    %c0_i32_0 = arith.constant 0 : i32
    %c0_i32_1 = arith.constant 0 : i32
    return %arg0, %c0_i32, %c0_i32_0 : i32, i32, i32
  }
  func.func @transform_4(%arg0: i32, %arg1: i32) -> (i32, i32, i32) {
    %c0_i32 = arith.constant 0 : i32
    %c0_i32_0 = arith.constant 0 : i32
    %c0_i32_1 = arith.constant 0 : i32
    return %arg0, %c0_i32, %c0_i32_0 : i32, i32, i32
  }
}

</mosaic_0001>

<llo_original>
// kernel: tpu_custom_call.1
$region0: #{tpu_custom_call.1}
  #allocation0 [shape = 'u32[]', space=smem, size = 0x4, offset = 0x4, fixed_abs, tag = 'smem constant byte address 0x4 - core index']
  #allocation1 [shape = 'u32[72,128]{1,0:T(1,128)}', space=vmem, size = 0x9000, scoped, tag = 'internal scratch']
  #allocation2 [shape = 'f32[4,128]{1,0:T(4,128)}', space=vmem, size = 0x800, scoped, tag = 'scratch operand']
  #allocation3 [shape = 'f32[4,128]{1,0:T(4,128)}', space=vmem, size = 0x800, scoped, tag = 'scratch operand']
  #allocation4 [shape = 'f32[4,128]{1,0:T(4,128)}', space=vmem, size = 0x800, scoped, tag = 'scratch operand']
  %s0 = inlined_call_operand.hbm [shape: f32[2,4,256], index: 0, kind: input, shape index: {}]
  %s1 = inlined_call_operand.hbm [shape: s32[2,256], index: 1, kind: input, shape index: {}]
  %s2 = inlined_call_operand.hbm [shape: f32[2,1,4], index: 2, kind: output, shape index: {0}]
  %s3 = inlined_call_operand.hbm [shape: f32[2,1,4], index: 3, kind: output, shape index: {1}]
  %s4 = inlined_call_operand.hbm [shape: f32[2,1,4], index: 4, kind: output, shape index: {2}]
  %5 = xla_tuple %s2, %s3, %s4
  %s6 = sld [smem:[#allocation0]]
  $region73: #{tpu_custom_call.1} parent=0
    _
  %s8 = ssub.s32 1, %s6
  %s9 = scalar_select 0, %s8, %s6
  $region1: #{tpu_custom_call.1} parent=0
    #allocation5 [shape = 'u8[8192]{0}', space=vmem, size = 0x2000, scoped, tag = 'input window, operand 0']
    #allocation6 [shape = 's32[2]{0}', space=sflag, size = 0x8, scoped, tag = 'scoped memory for tpu_custom_call.1']
    #allocation7 [shape = 's32[2]{0}', space=sflag, size = 0x8, scoped, tag = 'scoped memory for tpu_custom_call.1']
    #allocation8 [shape = 'u8[2048]{0}', space=vmem, size = 0x800, scoped, tag = 'input window, operand 1']
    #allocation9 [shape = 's32[2]{0}', space=sflag, size = 0x8, scoped, tag = 'scoped memory for tpu_custom_call.1']
    #allocation10 [shape = 'u8[1024]{0}', space=vmem, size = 0x400, scoped, tag = 'output window, operand 0']
    #allocation11 [shape = 'u8[1024]{0}', space=vmem, size = 0x400, scoped, tag = 'output window, operand 1']
    #allocation12 [shape = 's32[2]{0}', space=sflag, size = 0x8, scoped, tag = 'scoped memory for tpu_custom_call.1']
    #allocation13 [shape = 'u8[1024]{0}', space=vmem, size = 0x400, scoped, tag = 'output window, operand 2']
    %10 = vsyncpa [#allocation6], 0
    %s11 = scalar_lea.sflag [#allocation6], 1
    %12 = vsyncpa %s11, 0
    %13 = vsyncpa [#allocation9], 0
    %s14 = scalar_lea.sflag [#allocation9], 1
    %15 = vsyncpa %s14, 0
    %16 = vsyncpa [#allocation7], 0
    %s17 = scalar_lea.sflag [#allocation7], 1
    %18 = vsyncpa %s17, 0
    %19 = vsyncpa [#allocation12], 0
    %s20 = scalar_lea.sflag [#allocation12], 1
    %21 = vsyncpa %s20, 0
    loop: start=0, step=1, limit=4
    $region2: #{tpu_custom_call.1} parent=1 // loop_pre_header
      _
    $region3: #{tpu_custom_call.1} parent=1 // loop_header
      %s23 = sphi 0, %s27
      %p24 = scmp.ge.s32.totalorder %s23, 4
      %s30 = sphi 0, %s42
      %s31 = sphi 0, %s38
      %s32 = sphi 0, %s30
      %s33 = sphi 0, %s31
      %s34 = sphi 0, %s32
      %s35 = sphi 0, %s33
      %s47 = sphi 0, %s49
      %s50 = sphi 0, %s47
      %s51 = sphi 0, %s50
      %s67 = sphi 0, %s51
      %s75 = sphi 0, %s77
      %s78 = sphi 0, %s75
      %s79 = sphi 0, %s78
      %s95 = sphi 0, %s79
      %s101 = sphi 0, %s103
      %s104 = sphi 0, %s101
      %s105 = sphi 0, %s104
      %s121 = sphi 0, %s105
      %s127 = sphi 0, %s129
      %s130 = sphi 0, %s127
      %s131 = sphi 0, %s130
      %s147 = sphi 0, %s131
      %s153 = sphi 0, %s155
      %s156 = sphi 0, %s153
      %s157 = sphi 0, %s156
      %s173 = sphi 0, %s157
    $region4: #{tpu_custom_call.1} parent=1 // loop_header_branch
      %26 = sbr.rel (%p24) target = $region8
    $region5: #{tpu_custom_call.1} parent=1 // loop_body
      %s28 = ssub.s32 %s23, 1
      %s29 = ssub.s32 %s23, 2
      %s36 = sadd.s32 1, %s31
      %p37 = scmp.ge.s32.totalorder %s36, 1
      %s38 = scalar_select %p37, 0, %s36
      %s39 = sadd.s32 1, %s30
      %s40 = scalar_select %p37, %s39, %s30
      %p41 = scmp.ge.s32.totalorder %s40, 2
      %s42 = scalar_select %p41, 0, %s40
      %s43 = sadd.s32 %s30, %s31
      %s44 = sadd.s32 %s42, %s38
      %s45 = ssub.s32 %s43, %s44
      %p46 = scmp.eq.s32.totalorder %s45, 0
      %s48 = sadd.s32 %s47, 1
      %s49 = scalar_select %p46, %s47, %s48
      %p52 = pneg %p46
      %p53 = scmp.eq.s32.totalorder %s23, 1
      %p54 = por %p52, %p53
      %p55 = scmp.ne.s32.totalorder %s47, %s50
      %p56 = scmp.eq.s32.totalorder %s23, 0
      %p57 = por %p55, %p56
      %p58 = scmp.ne.s32.totalorder %s47, %s50
      %p59 = scmp.eq.s32.totalorder %s28, 1
      %p60 = por %p58, %p59
      %p61 = scmp.ne.s32.totalorder %s50, %s51
      %p62 = scmp.eq.s32.totalorder %s28, 0
      %p63 = por %p61, %p62
      %p64 = scmp.ne.s32.totalorder %s50, %s51
      %p65 = scmp.eq.s32.totalorder %s29, 1
      %p66 = por %p64, %p65
      %p68 = scmp.ne.s32.totalorder %s51, %s67
      %p69 = scmp.eq.s32.totalorder %s29, 0
      %p70 = por %p68, %p69
      %s71 = sadd.s32 %s30, %s31
      %s72 = sadd.s32 %s42, %s38
      %s73 = ssub.s32 %s71, %s72
      %p74 = scmp.eq.s32.totalorder %s73, 0
      %s76 = sadd.s32 %s75, 1
      %s77 = scalar_select %p74, %s75, %s76
      %p80 = pneg %p74
      %p81 = scmp.eq.s32.totalorder %s23, 1
      %p82 = por %p80, %p81
      %p83 = scmp.ne.s32.totalorder %s75, %s78
      %p84 = scmp.eq.s32.totalorder %s23, 0
      %p85 = por %p83, %p84
      %p86 = scmp.ne.s32.totalorder %s75, %s78
      %p87 = scmp.eq.s32.totalorder %s28, 1
      %p88 = por %p86, %p87
      %p89 = scmp.ne.s32.totalorder %s78, %s79
      %p90 = scmp.eq.s32.totalorder %s28, 0
      %p91 = por %p89, %p90
      %p92 = scmp.ne.s32.totalorder %s78, %s79
      %p93 = scmp.eq.s32.totalorder %s29, 1
      %p94 = por %p92, %p93
      %p96 = scmp.ne.s32.totalorder %s79, %s95
      %p97 = scmp.eq.s32.totalorder %s29, 0
      %p98 = por %p96, %p97
      %s99 = ssub.s32 %s30, %s42
      %p100 = scmp.eq.s32.totalorder %s99, 0
      %s102 = sadd.s32 %s101, 1
      %s103 = scalar_select %p100, %s101, %s102
      %p106 = pneg %p100
      %p107 = scmp.eq.s32.totalorder %s23, 1
      %p108 = por %p106, %p107
      %p109 = scmp.ne.s32.totalorder %s101, %s104
      %p110 = scmp.eq.s32.totalorder %s23, 0
      %p111 = por %p109, %p110
      %p112 = scmp.ne.s32.totalorder %s101, %s104
      %p113 = scmp.eq.s32.totalorder %s28, 1
      %p114 = por %p112, %p113
      %p115 = scmp.ne.s32.totalorder %s104, %s105
      %p116 = scmp.eq.s32.totalorder %s28, 0
      %p117 = por %p115, %p116
      %p118 = scmp.ne.s32.totalorder %s104, %s105
      %p119 = scmp.eq.s32.totalorder %s29, 1
      %p120 = por %p118, %p119
      %p122 = scmp.ne.s32.totalorder %s105, %s121
      %p123 = scmp.eq.s32.totalorder %s29, 0
      %p124 = por %p122, %p123
      %s125 = ssub.s32 %s30, %s42
      %p126 = scmp.eq.s32.totalorder %s125, 0
      %s128 = sadd.s32 %s127, 1
      %s129 = scalar_select %p126, %s127, %s128
      %p132 = pneg %p126
      %p133 = scmp.eq.s32.totalorder %s23, 1
      %p134 = por %p132, %p133
      %p135 = scmp.ne.s32.totalorder %s127, %s130
      %p136 = scmp.eq.s32.totalorder %s23, 0
      %p137 = por %p135, %p136
      %p138 = scmp.ne.s32.totalorder %s127, %s130
      %p139 = scmp.eq.s32.totalorder %s28, 1
      %p140 = por %p138, %p139
      %p141 = scmp.ne.s32.totalorder %s130, %s131
      %p142 = scmp.eq.s32.totalorder %s28, 0
      %p143 = por %p141, %p142
      %p144 = scmp.ne.s32.totalorder %s130, %s131
      %p145 = scmp.eq.s32.totalorder %s29, 1
      %p146 = por %p144, %p145
      %p148 = scmp.ne.s32.totalorder %s131, %s147
      %p149 = scmp.eq.s32.totalorder %s29, 0
      %p150 = por %p148, %p149
      %s151 = ssub.s32 %s30, %s42
      %p152 = scmp.eq.s32.totalorder %s151, 0
      %s154 = sadd.s32 %s153, 1
      %s155 = scalar_select %p152, %s153, %s154
      %p158 = pneg %p152
      %p159 = scmp.eq.s32.totalorder %s23, 1
      %p160 = por %p158, %p159
      %p161 = scmp.ne.s32.totalorder %s153, %s156
      %p162 = scmp.eq.s32.totalorder %s23, 0
      %p163 = por %p161, %p162
      %p164 = scmp.ne.s32.totalorder %s153, %s156
      %p165 = scmp.eq.s32.totalorder %s28, 1
      %p166 = por %p164, %p165
      %p167 = scmp.ne.s32.totalorder %s156, %s157
      %p168 = scmp.eq.s32.totalorder %s28, 0
      %p169 = por %p167, %p168
      %p170 = scmp.ne.s32.totalorder %s156, %s157
      %p171 = scmp.eq.s32.totalorder %s29, 1
      %p172 = por %p170, %p171
      %p174 = scmp.ne.s32.totalorder %s157, %s173
      %p175 = scmp.eq.s32.totalorder %s29, 0
      %p176 = por %p174, %p175
      %p177 = scmp.le.s32.totalorder 1, %s23
      %p178 = scmp.lt.s32.totalorder %s23, 3
      %p179 = pnand %p177, %p178
      %p180 = pneg %p179
      // Predicated region
      $region9: #{tpu_custom_call.1} parent=5 // pred_check
        _
      $region10: #{tpu_custom_call.1} parent=5 // pred_check_branch
        %182 = sbr.rel (%p179) target = $region12
      $region11: #{tpu_custom_call.1} parent=5 // pred_region
        %s183 = ssub.s32 %s23, 1
      $region12: #{tpu_custom_call.1} parent=5 // pred_fallthru
        _
      %p184 = scmp.lt.s32.totalorder %s23, 2
      // Predicated region
      $region13: #{tpu_custom_call.1} parent=5 // pred_check
        %p185 = pneg %p184
      $region14: #{tpu_custom_call.1} parent=5 // pred_check_branch
        %187 = sbr.rel (%p185) target = $region16
      $region15: #{tpu_custom_call.1} parent=5 // pred_region
        // Predicated region
        $region17: #{tpu_custom_call.1} parent=15 // pred_check
          %p188 = pneg %p57
        $region18: #{tpu_custom_call.1} parent=15 // pred_check_branch
          %190 = sbr.rel (%p188) target = $region20
        $region19: #{tpu_custom_call.1} parent=15 // pred_region
          %s191 = sand.u32 %s47, 1
          %s192 = scalar_lea.sflag [#allocation6], %s191
          %s193 = sand.u32 %s47, 1
          %s194 = smul.addr %s193, 8
          %s195 = scalar_lea.vmem [#allocation5], %s194
          %s196 = sadd.s32 %s30, %s31
          %198 = vsyncadd %s192, 0
          %s199 = smul.addr %s196, 4
          %s200 = scalar_lea.hbm %s0, %s199
          %s201 = sshll.u32 %s200, 4
          %s202 = int_to_ptr.hbm [resolvable:$true] %s201
          %s203 = sshll.u32 %s195, 4
          %s204 = int_to_ptr.vmem [resolvable:$true] %s203
          %209 = dma.hbm_to_vmem [thread:$0]  %s202, 128, %s204, %s192, 128, 64, 4
        $region20: #{tpu_custom_call.1} parent=15 // pred_fallthru
          _
        // Predicated region
        $region21: #{tpu_custom_call.1} parent=15 // pred_check
          %p210 = pneg %p85
        $region22: #{tpu_custom_call.1} parent=15 // pred_check_branch
          %212 = sbr.rel (%p210) target = $region24
        $region23: #{tpu_custom_call.1} parent=15 // pred_region
          %s213 = sand.u32 %s75, 1
          %s214 = scalar_lea.sflag [#allocation9], %s213
          %s215 = sand.u32 %s75, 1
          %s216 = smul.addr %s215, 2
          %s217 = scalar_lea.vmem [#allocation8], %s216
          %s218 = sadd.s32 %s30, %s31
          %220 = vsyncadd %s214, 0
          %s221 = smul.addr %s218, 2
          %s222 = scalar_lea.hbm %s1, %s221
          %s224 = sshll.u32 %s222, 4
          %s225 = int_to_ptr.hbm [resolvable:$true] %s224
          %s226 = sshll.u32 %s217, 4
          %s227 = int_to_ptr.vmem [resolvable:$true] %s226
          %229 = dma.hbm_to_vmem [thread:$0]  %s225, 32, %s227, %s214
        $region24: #{tpu_custom_call.1} parent=15 // pred_fallthru
          _
      $region16: #{tpu_custom_call.1} parent=5 // pred_fallthru
        _
      %p230 = scmp.le.s32.totalorder 1, %s23
      %p231 = scmp.lt.s32.totalorder %s23, 3
      %p232 = pnand %p230, %p231
      %p233 = pneg %p232
      // Predicated region
      $region25: #{tpu_custom_call.1} parent=5 // pred_check
        _
      $region26: #{tpu_custom_call.1} parent=5 // pred_check_branch
        %235 = sbr.rel (%p232) target = $region28
      $region27: #{tpu_custom_call.1} parent=5 // pred_region
        %s236 = ssub.s32 %s23, 1
        %s237 = sand.u32 %s50, 1
        %s238 = scalar_lea.sflag [#allocation6], %s237
        %s239 = sand.u32 %s50, 1
        %s240 = smul.addr %s239, 8
        %s241 = scalar_lea.vmem [#allocation5], %s240
        // Predicated region
        $region29: #{tpu_custom_call.1} parent=27 // pred_check
          %p242 = pneg %p63
        $region30: #{tpu_custom_call.1} parent=27 // pred_check_branch
          %244 = sbr.rel (%p242) target = $region32
        $region31: #{tpu_custom_call.1} parent=27 // pred_region
          %246 = dma.done %s238, 128
        $region32: #{tpu_custom_call.1} parent=27 // pred_fallthru
          _
        %s247 = sand.u32 %s78, 1
        %s248 = scalar_lea.sflag [#allocation9], %s247
        %s249 = sand.u32 %s78, 1
        %s250 = smul.addr %s249, 2
        %s251 = scalar_lea.vmem [#allocation8], %s250
        // Predicated region
        $region33: #{tpu_custom_call.1} parent=27 // pred_check
          %p252 = pneg %p91
        $region34: #{tpu_custom_call.1} parent=27 // pred_check_branch
          %254 = sbr.rel (%p252) target = $region36
        $region35: #{tpu_custom_call.1} parent=27 // pred_region
          %256 = dma.done %s248, 32
        $region36: #{tpu_custom_call.1} parent=27 // pred_fallthru
          _
        %s257 = sand.u32 %s50, 1
        %s258 = scalar_lea.sflag [#allocation6], %s257
        %s259 = sand.u32 %s50, 1
        %s260 = smul.addr %s259, 8
        %s261 = scalar_lea.vmem [#allocation5], %s260
        %p262 = pneg %p63
        %p263 = pneg %p60
        %s264 = sand.u32 %s78, 1
        %s265 = scalar_lea.sflag [#allocation9], %s264
        %s266 = sand.u32 %s78, 1
        %s267 = smul.addr %s266, 2
        %s268 = scalar_lea.vmem [#allocation8], %s267
        %p269 = pneg %p91
        %p270 = pneg %p88
        %p271 = pneg %p117
        %p272 = pneg %p114
        %s273 = sand.u32 %s104, 1
        %s274 = scalar_lea.sflag [#allocation7], %s273
        %s275 = sand.u32 %s104, 1
        %s276 = scalar_lea.vmem [#allocation10], %s275
        %p277 = pneg %p143
        %p278 = pneg %p140
        %s279 = sand.u32 %s28, 1
        %s280 = scalar_lea.sflag [#allocation12], %s279
        %s281 = sand.u32 %s130, 1
        %s282 = scalar_lea.vmem [#allocation11], %s281
        %p283 = pneg %p169
        %p284 = pneg %p166
        %s285 = sand.u32 %s28, 1
        %s286 = scalar_lea.sflag [#allocation12], %s285
        %s287 = sand.u32 %s156, 1
        %s288 = scalar_lea.vmem [#allocation13], %s287
        %s289 = sadd.s32 %s32, %s33
        %s290 = sadd.s32 %s32, %s33
        %p291 = scmp.eq.s32.totalorder %s33, 0
        // Predicated region
        $region37: #{tpu_custom_call.1} parent=27 // pred_check
          %p292 = pneg %p291
        $region38: #{tpu_custom_call.1} parent=27 // pred_check_branch
          %294 = sbr.rel (%p292) target = $region40
        $region39: #{tpu_custom_call.1} parent=27 // pred_region
          %295 = vst [vmem:[#allocation2] sm:$0xf] 0.0
          %296 = vst [vmem:[#allocation3] sm:$0xf] 0.0
          %297 = vst [vmem:[#allocation4] sm:$0xf] 0.0
        $region40: #{tpu_custom_call.1} parent=27 // pred_fallthru
          _
        %v298 = vld [vmem:[%s241] sm:$0xf]
        %v299 = vld [vmem:[%s241 + $0x4] sm:$0xf]
        %vm300 = vcmask 1043456
        %v301 = vsel %vm300, %v298, -inf
        %v302 = vrot.slane %v301, 4
        %v303 = vmax.f32 %v301, %v302
        %v304 = vrot.slane %v303, 2
        %v305 = vmax.f32 %v303, %v304
        %v306 = vrot.slane %v305, 1
        %v307 = vmax.f32 %v305, %v306
        %v308 = vsel %vm300, %v299, -inf
        %v309 = vrot.slane %v308, 4
        %v310 = vmax.f32 %v308, %v309
        %v311 = vrot.slane %v310, 2
        %v312 = vmax.f32 %v310, %v311
        %v313 = vrot.slane %v312, 1
        %v314 = vmax.f32 %v312, %v313
        %v315 = vsub.f32 %v298, %v307
        %v316 = vsub.f32 %v299, %v314
        %v317 = vmul.f32 %v315, 1.442695
        %v318 = vpow.pop %v317
        %v319 = vmul.f32 %v316, 1.442695
        %v320 = vpow.pop %v319
        %v321 = vsel %vm300, %v318, 0.0
        %v322 = vrot.slane %v321, 4
        %v323 = vadd.f32 %v321, %v322
        %v324 = vrot.slane %v323, 2
        %v325 = vadd.f32 %v323, %v324
        %v326 = vrot.slane %v325, 1
        %v327 = vadd.f32 %v325, %v326
        %v328 = vsel %vm300, %v320, 0.0
        %v329 = vrot.slane %v328, 4
        %v330 = vadd.f32 %v328, %v329
        %v331 = vrot.slane %v330, 2
        %v332 = vadd.f32 %v330, %v331
        %v333 = vrot.slane %v332, 1
        %v334 = vadd.f32 %v332, %v333
        %v335 = vrcp.pop %v327
        %v336 = vmul.f32 %v327, %v335
        %v337 = vsub.f32 1.0, %v336
        %v338 = vmul.f32 %v335, %v337
        %v339 = vadd.f32 %v335, %v338
        %vm340 = vweird.f32 %v327
        %vm341 = vweird.f32 %v335
        %vm342 = vmor %vm340, %vm341
        %v343 = vsel %vm342, %v335, %v339
        %v344 = vand.u32 2147483647, %v327
        %vm345 = vcmp.eq.f32.partialorder %v344, 8.507059e+37
        %v346 = vand.u32 %v327, 2147483648
        %v347 = vor.u32 1.1754944e-38, %v346
        %v348 = vsel %vm345, %v347, %v343
        %v349 = vrcp.pop %v334
        %v350 = vmul.f32 %v334, %v349
        %v351 = vsub.f32 1.0, %v350
        %v352 = vmul.f32 %v349, %v351
        %v353 = vadd.f32 %v349, %v352
        %vm354 = vweird.f32 %v334
        %vm355 = vweird.f32 %v349
        %vm356 = vmor %vm354, %vm355
        %v357 = vsel %vm356, %v349, %v353
        %v358 = vand.u32 2147483647, %v334
        %vm359 = vcmp.eq.f32.partialorder %v358, 8.507059e+37
        %v360 = vand.u32 %v334, 2147483648
        %v361 = vor.u32 1.1754944e-38, %v360
        %v362 = vsel %vm359, %v361, %v357
        %v363 = vmul.f32 %v318, %v348
        %v364 = vmul.f32 %v320, %v362
        %v365 = vld [vmem:[%s251] sm:$0x3]
        %v366 = vlaneseq
        %v367 = vshrl.u32 %v366, 7
        %v368 = vrot.slane %v365, 1
        %v369 = vperm.slane %v365, 0
        %v370 = vperm.slane %v368, 0
        %vm371 = vcmp.eq.s32.totalorder %v369, %v367
        %vm372 = vcmp.eq.s32.totalorder %v370, %v367
        %v373 = vld [vmem:[#allocation2] sm:$0xf]
        %v374 = vsel %vm371, %v363, 0.0
        %v375 = vsel %vm372, %v364, 0.0
        %v376 = vsel %vm300, %v374, 0.0
        %v377 = vsel %vm300, %v375, 0.0
        %v378 = vadd.f32 %v376, %v377
        %v379 = vadd.f32 %v373, %v378
        %380 = vst [vmem:[#allocation2] sm:$0xf] %v379
        %v381 = vld [vmem:[#allocation3] sm:$0xf]
        %v382 = vsel %vm300, %v363, 0.0
        %v383 = vsel %vm300, %v364, 0.0
        %v384 = vadd.f32 %v382, %v383
        %v385 = vadd.f32 %v381, %v384
        %386 = vst [vmem:[#allocation3] sm:$0xf] %v385
        %v387 = vld [vmem:[#allocation4] sm:$0xf]
        %v388 = vsel %vm371, 1.0, 0.0
        %v389 = vsel %vm372, 1.0, 0.0
        %v390 = vsel %vm300, %v388, 0.0
        %v391 = vsel %vm300, %v389, 0.0
        %v392 = vadd.f32 %v390, %v391
        %v393 = vadd.f32 %v387, %v392
        %394 = vst [vmem:[#allocation4] sm:$0xf] %v393
        // Predicated region
        $region41: #{tpu_custom_call.1} parent=27 // pred_check
          %p395 = pneg %p291
        $region42: #{tpu_custom_call.1} parent=27 // pred_check_branch
          %397 = sbr.rel (%p395) target = $region44
        $region43: #{tpu_custom_call.1} parent=27 // pred_region
          %v398 = vld [vmem:[#allocation2] sm:$0xf]
          %v399 = vsel %vm300, %v398, 0.0
          %400 = vadd.xlane.f32.xlu0 %v399
          %v401 = vpop.xlane.xlu0 %400
          %v402 = vld [vmem:[#allocation3] sm:$0xf]
          %v403 = vsel %vm300, %v402, 0.0
          %404 = vadd.xlane.f32.xlu0 %v403
          %v405 = vpop.xlane.xlu0 %404
          %v406 = vld [vmem:[#allocation4] sm:$0xf]
          %v407 = vsel %vm300, %v406, 0.0
          %408 = vadd.xlane.f32.xlu0 %v407
          %v409 = vpop.xlane.xlu0 %408
          %v411 = vlaneseq
          %v412 = vand.u32 %v411, 127
          %v413 = vperm.slane %v401, %v412
          %vm415 = vcmask 24576
          %416 = vst.msk [vmem:[%s276] sm:$0x1] %vm415, %v413
          %v417 = vadd.f32 %v405, %v409
          %v419 = vperm.slane %v417, %v412
          %421 = vst.msk [vmem:[%s282] sm:$0x1] %vm415, %v419
          %v423 = vperm.slane %v409, %v412
          %425 = vst.msk [vmem:[%s288] sm:$0x1] %vm415, %v423
        $region44: #{tpu_custom_call.1} parent=27 // pred_fallthru
          _
        %s426 = sand.u32 %s104, 1
        %s427 = scalar_lea.sflag [#allocation7], %s426
        %s428 = sand.u32 %s104, 1
        %s429 = scalar_lea.vmem [#allocation10], %s428
        %s430 = sand.u32 %s28, 1
        %s431 = scalar_lea.sflag [#allocation12], %s430
        %s432 = sand.u32 %s130, 1
        %s433 = scalar_lea.vmem [#allocation11], %s432
        %s434 = sand.u32 %s28, 1
        %s435 = scalar_lea.sflag [#allocation12], %s434
        %s436 = sand.u32 %s156, 1
        %s437 = scalar_lea.vmem [#allocation13], %s436
        // Predicated region
        $region45: #{tpu_custom_call.1} parent=27 // pred_check
          %p438 = pneg %p114
        $region46: #{tpu_custom_call.1} parent=27 // pred_check_branch
          %440 = sbr.rel (%p438) target = $region48
        $region47: #{tpu_custom_call.1} parent=27 // pred_region
          %442 = vsyncadd %s427, 0
          %s443 = scalar_lea.hbm %s2, %s32
          %s445 = sshll.u32 %s429, 4
          %s446 = int_to_ptr.vmem [resolvable:$true] %s445
          %s447 = sshll.u32 %s443, 4
          %s448 = int_to_ptr.hbm [resolvable:$true] %s447
          %450 = dma.vmem_to_hbm [thread:$0]  %s446, 16, %s448, %s427
        $region48: #{tpu_custom_call.1} parent=27 // pred_fallthru
          _
        // Predicated region
        $region49: #{tpu_custom_call.1} parent=27 // pred_check
          %p451 = pneg %p140
        $region50: #{tpu_custom_call.1} parent=27 // pred_check_branch
          %453 = sbr.rel (%p451) target = $region52
        $region51: #{tpu_custom_call.1} parent=27 // pred_region
          %455 = vsyncadd %s431, 0
          %s456 = scalar_lea.hbm %s3, %s32
          %s458 = sshll.u32 %s433, 4
          %s459 = int_to_ptr.vmem [resolvable:$true] %s458
          %s460 = sshll.u32 %s456, 4
          %s461 = int_to_ptr.hbm [resolvable:$true] %s460
          %463 = dma.vmem_to_hbm [thread:$0]  %s459, 16, %s461, %s431
        $region52: #{tpu_custom_call.1} parent=27 // pred_fallthru
          _
        // Predicated region
        $region53: #{tpu_custom_call.1} parent=27 // pred_check
          %p464 = pneg %p166
        $region54: #{tpu_custom_call.1} parent=27 // pred_check_branch
          %466 = sbr.rel (%p464) target = $region56
        $region55: #{tpu_custom_call.1} parent=27 // pred_region
          %468 = vsyncadd %s435, 0
          %s469 = scalar_lea.hbm %s4, %s32
          %s471 = sshll.u32 %s437, 4
          %s472 = int_to_ptr.vmem [resolvable:$true] %s471
          %s473 = sshll.u32 %s469, 4
          %s474 = int_to_ptr.hbm [resolvable:$true] %s473
          %476 = dma.vmem_to_hbm [thread:$0]  %s472, 16, %s474, %s435
        $region56: #{tpu_custom_call.1} parent=27 // pred_fallthru
          _
      $region28: #{tpu_custom_call.1} parent=5 // pred_fallthru
        _
      %p477 = scmp.le.s32.totalorder 2, %s23
      // Predicated region
      $region57: #{tpu_custom_call.1} parent=5 // pred_check
        %p478 = pneg %p477
      $region58: #{tpu_custom_call.1} parent=5 // pred_check_branch
        %480 = sbr.rel (%p478) target = $region60
      $region59: #{tpu_custom_call.1} parent=5 // pred_region
        %s481 = ssub.s32 %s23, 2
        // Predicated region
        $region61: #{tpu_custom_call.1} parent=59 // pred_check
          %p482 = pneg %p120
        $region62: #{tpu_custom_call.1} parent=59 // pred_check_branch
          %484 = sbr.rel (%p482) target = $region64
        $region63: #{tpu_custom_call.1} parent=59 // pred_region
          %s485 = sand.u32 %s105, 1
          %s486 = scalar_lea.sflag [#allocation7], %s485
          %s487 = sand.u32 %s105, 1
          %s488 = scalar_lea.vmem [#allocation10], %s487
          %490 = dma.done %s486, 16
        $region64: #{tpu_custom_call.1} parent=59 // pred_fallthru
          _
        // Predicated region
        $region65: #{tpu_custom_call.1} parent=59 // pred_check
          %p491 = pneg %p146
        $region66: #{tpu_custom_call.1} parent=59 // pred_check_branch
          %493 = sbr.rel (%p491) target = $region68
        $region67: #{tpu_custom_call.1} parent=59 // pred_region
          %s494 = sand.u32 %s29, 1
          %s495 = scalar_lea.sflag [#allocation12], %s494
          %s496 = sand.u32 %s131, 1
          %s497 = scalar_lea.vmem [#allocation11], %s496
          %499 = dma.done %s495, 16
        $region68: #{tpu_custom_call.1} parent=59 // pred_fallthru
          _
        // Predicated region
        $region69: #{tpu_custom_call.1} parent=59 // pred_check
          %p500 = pneg %p172
        $region70: #{tpu_custom_call.1} parent=59 // pred_check_branch
          %502 = sbr.rel (%p500) target = $region72
        $region71: #{tpu_custom_call.1} parent=59 // pred_region
          %s503 = sand.u32 %s29, 1
          %s504 = scalar_lea.sflag [#allocation12], %s503
          %s505 = sand.u32 %s157, 1
          %s506 = scalar_lea.vmem [#allocation13], %s505
          %508 = dma.done %s504, 16
        $region72: #{tpu_custom_call.1} parent=59 // pred_fallthru
          _
      $region60: #{tpu_custom_call.1} parent=5 // pred_fallthru
        _
    $region6: #{tpu_custom_call.1} parent=1 // loop_footer
      %s27 = sadd.s32 1, %s23
    $region7: #{tpu_custom_call.1} parent=1 // loop_footer_branch
      %22 = sbr.rel target = $region3
    $region8: #{tpu_custom_call.1} parent=1 // loop_exit
      _
    %509 = vsyncpa [#allocation6], 1
    %s510 = scalar_lea.sflag [#allocation6], 1
    %511 = vsyncpa %s510, 1
    %512 = vsyncpa [#allocation9], 1
    %s513 = scalar_lea.sflag [#allocation9], 1
    %514 = vsyncpa %s513, 1
    %515 = vsyncpa [#allocation7], 1
    %s516 = scalar_lea.sflag [#allocation7], 1
    %517 = vsyncpa %s516, 1
    %518 = vsyncpa [#allocation12], 1
    %s519 = scalar_lea.sflag [#allocation12], 1
    %520 = vsyncpa %s519, 1

</llo_original>
